<compile_context>
chip_gen: v7x
topology: tpu7x:2x2x1
jax: 0.10.0
libtpu: 0.0.40
codegen_flags: <defaults>
</compile_context>

<pallas_src>
import functools

import jax
import jax.numpy as jnp
from jax.experimental import pallas as pl
from jax.experimental.pallas import tpu as pltpu

DIM = 32                 # Dim = len(Data[0, :]) — feature width for the demo
BATCH = 512              # demo batch (gives a 4-step grid with the default tile)
PAD = 32                 # per-sample padded layer width (all layers <= 32 wide)
PACK = 4                 # samples packed per 128-lane row
WIDE = PAD * PACK        # 128 — lane-dense working width
LAYER_SIZES = [(DIM, 24), (24, 16), (16, 24), (24, 24), (24, DIM)]
NUM_LAYERS = len(LAYER_SIZES)


def _round_up(n: int, m: int) -> int:
    return ((n + m - 1) // m) * m


# --------------------------------------------------------------------------
# Kernel
# --------------------------------------------------------------------------
def autoencoder_kernel(x_ref, w_ref, b_ref, o_ref):
    """x_ref: (TB, WIDE) f32   — 4 samples per row, each in a 32-lane segment
       w_ref: (5, WIDE, WIDE) bf16 — per-layer block-diagonal weights
       b_ref: (5, 1, WIDE)  f32  — per-layer biases, tiled per segment
       o_ref: (TB, WIDE) f32
    """
    h = x_ref[...].astype(jnp.bfloat16)          # bf16 operands for the MXU

    # Layers 0..3: Linear + ReLU (zero-padded lanes stay exactly zero).
    for layer in range(NUM_LAYERS - 1):
        acc = jnp.dot(h, w_ref[layer], preferred_element_type=jnp.float32)
        acc = jnp.maximum(acc + b_ref[layer], 0.0)   # f32 bias-add / ReLU on VPU
        h = acc.astype(jnp.bfloat16)                 # single bf16 cast per layer

    # Final layer: Linear + Sigmoid.  Full 128-lane, unmasked store.
    z = jnp.dot(h, w_ref[NUM_LAYERS - 1],
                preferred_element_type=jnp.float32) + b_ref[NUM_LAYERS - 1]
    o_ref[...] = jax.nn.sigmoid(z).astype(o_ref.dtype)


# --------------------------------------------------------------------------
# Wrapper
# --------------------------------------------------------------------------
@functools.partial(jax.jit, static_argnames=("tb_rows",))
def autoencoder_forward(x, w_slab, b_slab, *, tb_rows=32):
    """x: (B, DIM) float32.  w_slab: (5, WIDE, WIDE) bf16.  b_slab: (5, 1, WIDE) f32.

    `tb_rows` = packed rows per grid step (each row carries PACK samples)."""
    B, D = x.shape

    # Pad the feature dim to the per-sample segment width (no-op when DIM==PAD).
    if D < PAD:
        x = jnp.pad(x, ((0, 0), (0, PAD - D)))

    # Pad the batch so it packs evenly into 128-lane rows, then pack.
    Bp = _round_up(B, PACK)
    if Bp != B:
        x = jnp.pad(x, ((0, Bp - B), (0, 0)))
    rows = Bp // PACK
    xw = x.reshape(rows, WIDE)                    # lane-dense layout (free reshape)

    # Row tile: forced multiple of 8 sublanes, capped at the padded row count.
    TB = min(_round_up(tb_rows, 8), _round_up(rows, 8))
    rows_p = _round_up(rows, TB)
    if rows_p != rows:
        xw = jnp.pad(xw, ((0, rows_p - rows), (0, 0)))

    grid = (rows_p // TB,)
    out = pl.pallas_call(
        autoencoder_kernel,
        out_shape=jax.ShapeDtypeStruct((rows_p, WIDE), jnp.float32),
        grid=grid,
        in_specs=[
            # batch-row tile streams through the software pipeline
            pl.BlockSpec((TB, WIDE), lambda i: (i, 0)),
            # weights / biases: constant index map -> DMA'd once, VMEM-resident
            pl.BlockSpec((NUM_LAYERS, WIDE, WIDE), lambda i: (0, 0, 0)),
            pl.BlockSpec((NUM_LAYERS, 1, WIDE), lambda i: (0, 0, 0)),
        ],
        out_specs=pl.BlockSpec((TB, WIDE), lambda i: (i, 0)),
        compiler_params=pltpu.CompilerParams(
            dimension_semantics=("parallel",),   # shard batch steps across TCs (v7x)
        ),
    )(xw, w_slab, b_slab)

    # Unpack back to one sample per row and drop batch/feature padding.
    return out[:rows].reshape(Bp, PAD)[:B, :D]


# --------------------------------------------------------------------------
# Parameter construction / packing
# --------------------------------------------------------------------------
def init_params(key, dim):
    """Deterministic init mirroring nn.Linear shapes.
    Weights stored as (in_features, out_features) (i.e. PyTorch W.T)."""
    sizes = [(dim, 24), (24, 16), (16, 24), (24, 24), (24, dim)]
    params = []
    for (fan_in, fan_out) in sizes:
        key, kw, kb = jax.random.split(key, 3)
        bound = fan_in ** -0.5
        w = jax.random.uniform(kw, (fan_in, fan_out), jnp.float32, -bound, bound)
        b = jax.random.uniform(kb, (fan_out,), jnp.float32, -bound, bound)
        params.append((w, b))
    return params


def pack_params(params, pad=PAD, pack=PACK):
    """Zero-pad every (in,out) weight to (pad,pad), replicate it `pack` times
    along the diagonal of a (pad*pack, pad*pack) block-diagonal matrix, and
    stack all layers into one bf16 slab.  Biases are tiled per segment.
    Done once, outside the kernel."""
    wide = pad * pack
    w_slab = jnp.zeros((len(params), wide, wide), jnp.float32)
    b_slab = jnp.zeros((len(params), 1, wide), jnp.float32)
    for i, (w, b) in enumerate(params):
        fi, fo = w.shape
        for s in range(pack):
            r, c = s * pad, s * pad
            w_slab = w_slab.at[i, r:r + fi, c:c + fo].set(w)
            b_slab = b_slab.at[i, 0, c:c + fo].set(b)
    return w_slab.astype(jnp.bfloat16), b_slab


def reference_forward(x, params):
    """Plain-JAX f32 reference for a sanity check."""
    h = x
    for i, (w, b) in enumerate(params):
        h = h @ w + b
        if i < len(params) - 1:
            h = jnp.maximum(h, 0.0)
    return jax.nn.sigmoid(h)


# --------------------------------------------------------------------------
if __name__ == "__main__":
    key = jax.random.PRNGKey(0)
    key, kx = jax.random.split(key)
    x = jax.random.uniform(kx, (BATCH, DIM), jnp.float32)  # autoencoder-style inputs in [0,1)

    params = init_params(key, DIM)
    w_slab, b_slab = pack_params(params)

    out = autoencoder_forward(x, w_slab, b_slab, tb_rows=32)   # grid = (4,)
    out = jax.block_until_ready(out)

    ref = reference_forward(x, params)
    assert out.shape == (BATCH, DIM)
    # bf16 matmuls with f32 accumulation: loosened tolerance vs f32 reference.
    err = jnp.max(jnp.abs(out - ref))
    assert jnp.allclose(out, ref, atol=2e-2, rtol=2e-2), f"max abs err {err}"

    print("KERNEL_OK")
</pallas_src>

<mosaic_0001>
module attributes {stable_mosaic.version = 11 : i64} {
  func.func @autoencoder_kernel(%arg0: i32, %arg1: memref<32x128xf32, #tpu.memory_space<vmem>>, %arg2: memref<5x128x128xbf16, #tpu.memory_space<vmem>>, %arg3: memref<5x1x128xf32, #tpu.memory_space<vmem>>, %arg4: memref<32x128xf32, #tpu.memory_space<vmem>>) attributes {dimension_semantics = [#tpu.dimension_semantics<parallel>], iteration_bounds = array<i64: 4>, scalar_prefetch = 0 : i64, scratch_operands = 0 : i64, tpu.core_type = #tpu.core_type<tc>, window_params = [{transform_indices = @transform_0, window_bounds = array<i64: 32, 128>}, {pipeline_mode = #tpu.pipeline_mode<synchronous>, transform_indices = @transform_1, window_bounds = array<i64: 5, 128, 128>}, {pipeline_mode = #tpu.pipeline_mode<synchronous>, transform_indices = @transform_2, window_bounds = array<i64: 5, 1, 128>}, {transform_indices = @transform_3, window_bounds = array<i64: 32, 128>}]} {
    %c0 = arith.constant 0 : index
    %c0_0 = arith.constant 0 : index
    %0 = vector.load %arg1[%c0, %c0_0] : memref<32x128xf32, #tpu.memory_space<vmem>>, vector<32x128xf32>
    %1 = arith.truncf %0 : vector<32x128xf32> to vector<32x128xbf16>
    %c0_1 = arith.constant 0 : index
    %c0_2 = arith.constant 0 : index
    %c0_3 = arith.constant 0 : index
    %2 = vector.load %arg2[%c0_1, %c0_2, %c0_3] : memref<5x128x128xbf16, #tpu.memory_space<vmem>>, vector<1x128x128xbf16>
    %3 = vector.shape_cast %2 : vector<1x128x128xbf16> to vector<128x128xbf16>
    %cst = arith.constant dense<0.000000e+00> : vector<32x128xf32>
    %4 = tpu.matmul %1, %3, %cst {dimension_numbers = #tpu.dot_dimension_numbers<[1], [0], [0], [1], [0, 0, 1, 1], [], []>} : vector<32x128xbf16>, vector<128x128xbf16>, vector<32x128xf32> -> vector<32x128xf32>
    %c0_4 = arith.constant 0 : index
    %c0_5 = arith.constant 0 : index
    %c0_6 = arith.constant 0 : index
    %5 = vector.load %arg3[%c0_4, %c0_5, %c0_6] : memref<5x1x128xf32, #tpu.memory_space<vmem>>, vector<1x1x128xf32>
    %6 = vector.shape_cast %5 : vector<1x1x128xf32> to vector<1x128xf32>
    %7 = vector.broadcast %6 : vector<1x128xf32> to vector<32x128xf32>
    %8 = arith.addf %4, %7 : vector<32x128xf32>
    %cst_7 = arith.constant 0.000000e+00 : f32
    %9 = vector.broadcast %cst_7 : f32 to vector<32x128xf32>
    %10 = arith.maximumf %8, %9 : vector<32x128xf32>
    %11 = arith.truncf %10 : vector<32x128xf32> to vector<32x128xbf16>
    %c1 = arith.constant 1 : index
    %c0_8 = arith.constant 0 : index
    %c0_9 = arith.constant 0 : index
    %12 = vector.load %arg2[%c1, %c0_8, %c0_9] : memref<5x128x128xbf16, #tpu.memory_space<vmem>>, vector<1x128x128xbf16>
    %13 = vector.shape_cast %12 : vector<1x128x128xbf16> to vector<128x128xbf16>
    %cst_10 = arith.constant dense<0.000000e+00> : vector<32x128xf32>
    %14 = tpu.matmul %11, %13, %cst_10 {dimension_numbers = #tpu.dot_dimension_numbers<[1], [0], [0], [1], [0, 0, 1, 1], [], []>} : vector<32x128xbf16>, vector<128x128xbf16>, vector<32x128xf32> -> vector<32x128xf32>
    %c1_11 = arith.constant 1 : index
    %c0_12 = arith.constant 0 : index
    %c0_13 = arith.constant 0 : index
    %15 = vector.load %arg3[%c1_11, %c0_12, %c0_13] : memref<5x1x128xf32, #tpu.memory_space<vmem>>, vector<1x1x128xf32>
    %16 = vector.shape_cast %15 : vector<1x1x128xf32> to vector<1x128xf32>
    %17 = vector.broadcast %16 : vector<1x128xf32> to vector<32x128xf32>
    %18 = arith.addf %14, %17 : vector<32x128xf32>
    %cst_14 = arith.constant 0.000000e+00 : f32
    %19 = vector.broadcast %cst_14 : f32 to vector<32x128xf32>
    %20 = arith.maximumf %18, %19 : vector<32x128xf32>
    %21 = arith.truncf %20 : vector<32x128xf32> to vector<32x128xbf16>
    %c2 = arith.constant 2 : index
    %c0_15 = arith.constant 0 : index
    %c0_16 = arith.constant 0 : index
    %22 = vector.load %arg2[%c2, %c0_15, %c0_16] : memref<5x128x128xbf16, #tpu.memory_space<vmem>>, vector<1x128x128xbf16>
    %23 = vector.shape_cast %22 : vector<1x128x128xbf16> to vector<128x128xbf16>
    %cst_17 = arith.constant dense<0.000000e+00> : vector<32x128xf32>
    %24 = tpu.matmul %21, %23, %cst_17 {dimension_numbers = #tpu.dot_dimension_numbers<[1], [0], [0], [1], [0, 0, 1, 1], [], []>} : vector<32x128xbf16>, vector<128x128xbf16>, vector<32x128xf32> -> vector<32x128xf32>
    %c2_18 = arith.constant 2 : index
    %c0_19 = arith.constant 0 : index
    %c0_20 = arith.constant 0 : index
    %25 = vector.load %arg3[%c2_18, %c0_19, %c0_20] : memref<5x1x128xf32, #tpu.memory_space<vmem>>, vector<1x1x128xf32>
    %26 = vector.shape_cast %25 : vector<1x1x128xf32> to vector<1x128xf32>
    %27 = vector.broadcast %26 : vector<1x128xf32> to vector<32x128xf32>
    %28 = arith.addf %24, %27 : vector<32x128xf32>
    %cst_21 = arith.constant 0.000000e+00 : f32
    %29 = vector.broadcast %cst_21 : f32 to vector<32x128xf32>
    %30 = arith.maximumf %28, %29 : vector<32x128xf32>
    %31 = arith.truncf %30 : vector<32x128xf32> to vector<32x128xbf16>
    %c3 = arith.constant 3 : index
    %c0_22 = arith.constant 0 : index
    %c0_23 = arith.constant 0 : index
    %32 = vector.load %arg2[%c3, %c0_22, %c0_23] : memref<5x128x128xbf16, #tpu.memory_space<vmem>>, vector<1x128x128xbf16>
    %33 = vector.shape_cast %32 : vector<1x128x128xbf16> to vector<128x128xbf16>
    %cst_24 = arith.constant dense<0.000000e+00> : vector<32x128xf32>
    %34 = tpu.matmul %31, %33, %cst_24 {dimension_numbers = #tpu.dot_dimension_numbers<[1], [0], [0], [1], [0, 0, 1, 1], [], []>} : vector<32x128xbf16>, vector<128x128xbf16>, vector<32x128xf32> -> vector<32x128xf32>
    %c3_25 = arith.constant 3 : index
    %c0_26 = arith.constant 0 : index
    %c0_27 = arith.constant 0 : index
    %35 = vector.load %arg3[%c3_25, %c0_26, %c0_27] : memref<5x1x128xf32, #tpu.memory_space<vmem>>, vector<1x1x128xf32>
    %36 = vector.shape_cast %35 : vector<1x1x128xf32> to vector<1x128xf32>
    %37 = vector.broadcast %36 : vector<1x128xf32> to vector<32x128xf32>
    %38 = arith.addf %34, %37 : vector<32x128xf32>
    %cst_28 = arith.constant 0.000000e+00 : f32
    %39 = vector.broadcast %cst_28 : f32 to vector<32x128xf32>
    %40 = arith.maximumf %38, %39 : vector<32x128xf32>
    %41 = arith.truncf %40 : vector<32x128xf32> to vector<32x128xbf16>
    %c4 = arith.constant 4 : index
    %c0_29 = arith.constant 0 : index
    %c0_30 = arith.constant 0 : index
    %42 = vector.load %arg2[%c4, %c0_29, %c0_30] : memref<5x128x128xbf16, #tpu.memory_space<vmem>>, vector<1x128x128xbf16>
    %43 = vector.shape_cast %42 : vector<1x128x128xbf16> to vector<128x128xbf16>
    %cst_31 = arith.constant dense<0.000000e+00> : vector<32x128xf32>
    %44 = tpu.matmul %41, %43, %cst_31 {dimension_numbers = #tpu.dot_dimension_numbers<[1], [0], [0], [1], [0, 0, 1, 1], [], []>} : vector<32x128xbf16>, vector<128x128xbf16>, vector<32x128xf32> -> vector<32x128xf32>
    %c4_32 = arith.constant 4 : index
    %c0_33 = arith.constant 0 : index
    %c0_34 = arith.constant 0 : index
    %45 = vector.load %arg3[%c4_32, %c0_33, %c0_34] : memref<5x1x128xf32, #tpu.memory_space<vmem>>, vector<1x1x128xf32>
    %46 = vector.shape_cast %45 : vector<1x1x128xf32> to vector<1x128xf32>
    %47 = vector.broadcast %46 : vector<1x128xf32> to vector<32x128xf32>
    %48 = arith.addf %44, %47 : vector<32x128xf32>
    %49 = arith.negf %48 : vector<32x128xf32>
    %50 = math.exp %49 : vector<32x128xf32>
    %cst_35 = arith.constant 1.000000e+00 : f32
    %51 = vector.broadcast %cst_35 : f32 to vector<32x128xf32>
    %52 = arith.addf %51, %50 : vector<32x128xf32>
    %53 = arith.divf %51, %52 : vector<32x128xf32>
    %c0_36 = arith.constant 0 : index
    %c0_37 = arith.constant 0 : index
    %54 = vector.load %arg4[%c0_36, %c0_37] : memref<32x128xf32, #tpu.memory_space<vmem>>, vector<32x128xf32>
    tpu.vector_store %arg4[%c0_36, %c0_37], %53 {strides = array<i32>} : memref<32x128xf32, #tpu.memory_space<vmem>>, vector<32x128xf32>,
    return
  }
  func.func @transform_0(%arg0: i32) -> (i32, i32) {
    %c0_i32 = arith.constant 0 : i32
    %c0_i32_0 = arith.constant 0 : i32
    return %arg0, %c0_i32 : i32, i32
  }
  func.func @transform_1(%arg0: i32) -> (i32, i32, i32) {
    %c0_i32 = arith.constant 0 : i32
    %c0_i32_0 = arith.constant 0 : i32
    %c0_i32_1 = arith.constant 0 : i32
    %c0_i32_2 = arith.constant 0 : i32
    return %c0_i32, %c0_i32_0, %c0_i32_1 : i32, i32, i32
  }
  func.func @transform_2(%arg0: i32) -> (i32, i32, i32) {
    %c0_i32 = arith.constant 0 : i32
    %c0_i32_0 = arith.constant 0 : i32
    %c0_i32_1 = arith.constant 0 : i32
    %c0_i32_2 = arith.constant 0 : i32
    return %c0_i32, %c0_i32_0, %c0_i32_1 : i32, i32, i32
  }
  func.func @transform_3(%arg0: i32) -> (i32, i32) {
    %c0_i32 = arith.constant 0 : i32
    %c0_i32_0 = arith.constant 0 : i32
    return %arg0, %c0_i32 : i32, i32
  }
}

</mosaic_0001>

<llo_original>
// kernel: autoencoder_forward.1
$region0: #{autoencoder_forward.1}
  #allocation0 [shape = 'u32[]', space=smem, size = 0x4, offset = 0x4, fixed_abs, tag = 'smem constant byte address 0x4 - core index']
  #allocation1 [shape = 'u32[144,128]{1,0:T(1,128)}', space=vmem, size = 0x12000, scoped, tag = 'internal scratch']
  %s0 = inlined_call_operand.vmem [shape: f32[128,128], index: 0, kind: input, shape index: {}]
  %s1 = inlined_call_operand.vmem [shape: bf16[5,128,128], index: 1, kind: input, shape index: {}]
  %s2 = inlined_call_operand.vmem [shape: f32[5,1,128], index: 2, kind: input, shape index: {}]
  %s3 = inlined_call_operand.vmem [shape: f32[128,128], index: 3, kind: output, shape index: {}]
  %s4 = sld [smem:[#allocation0]]
  $region45: #{autoencoder_forward.1} parent=0
    _
  %s6 = ssub.s32 1, %s4
  %s7 = scalar_select 0, %s6, %s4
  loop: start=0, step=1, limit=6
  $region2: #{autoencoder_forward.1} parent=0 // loop_pre_header
    _
  $region3: #{autoencoder_forward.1} parent=0 // loop_header
    %s9 = sphi 0, %s13
    %p10 = scmp.ge.s32.totalorder %s9, 6
    %s19 = sphi 0, %s21
    %s22 = sphi 0, %s19
    %s23 = sphi 0, %s22
    %s39 = sphi 0, %s23
    %s43 = sphi 0, %s43
    %s45 = sphi 0, %s43
    %s46 = sphi 0, %s45
    %s60 = sphi 0, %s46
    %s64 = sphi 0, %s64
    %s66 = sphi 0, %s64
    %s67 = sphi 0, %s66
    %s81 = sphi 0, %s67
    %s87 = sphi 0, %s89
    %s90 = sphi 0, %s87
    %s91 = sphi 0, %s90
    %s107 = sphi 0, %s91
  $region4: #{autoencoder_forward.1} parent=0 // loop_header_branch
    %12 = sbr.rel (%p10) target = $region8
  $region5: #{autoencoder_forward.1} parent=0 // loop_body
    %s14 = ssub.s32 %s9, 1
    %s15 = ssub.s32 %s9, 2
    %s16 = sadd.s32 %s9, 1
    %s17 = ssub.s32 %s9, %s16
    %p18 = scmp.eq.s32.totalorder %s17, 0
    %s20 = sadd.s32 %s19, 1
    %s21 = scalar_select %p18, %s19, %s20
    %p24 = pneg %p18
    %p25 = scmp.eq.s32.totalorder %s9, 3
    %p26 = por %p24, %p25
    %p27 = scmp.ne.s32.totalorder %s19, %s22
    %p28 = scmp.eq.s32.totalorder %s9, 0
    %p29 = por %p27, %p28
    %p30 = scmp.ne.s32.totalorder %s19, %s22
    %p31 = scmp.eq.s32.totalorder %s14, 3
    %p32 = por %p30, %p31
    %p33 = scmp.ne.s32.totalorder %s22, %s23
    %p34 = scmp.eq.s32.totalorder %s14, 0
    %p35 = por %p33, %p34
    %p36 = scmp.ne.s32.totalorder %s22, %s23
    %p37 = scmp.eq.s32.totalorder %s15, 3
    %p38 = por %p36, %p37
    %p40 = scmp.ne.s32.totalorder %s23, %s39
    %p41 = scmp.eq.s32.totalorder %s15, 0
    %p42 = por %p40, %p41
    %s44 = sadd.s32 %s43, 1
    %p47 = scmp.eq.s32.totalorder %s9, 3
    %p48 = scmp.ne.s32.totalorder %s43, %s45
    %p49 = scmp.eq.s32.totalorder %s9, 0
    %p50 = por %p48, %p49
    %p51 = scmp.ne.s32.totalorder %s43, %s45
    %p52 = scmp.eq.s32.totalorder %s14, 3
    %p53 = por %p51, %p52
    %p54 = scmp.ne.s32.totalorder %s45, %s46
    %p55 = scmp.eq.s32.totalorder %s14, 0
    %p56 = por %p54, %p55
    %p57 = scmp.ne.s32.totalorder %s45, %s46
    %p58 = scmp.eq.s32.totalorder %s15, 3
    %p59 = por %p57, %p58
    %p61 = scmp.ne.s32.totalorder %s46, %s60
    %p62 = scmp.eq.s32.totalorder %s15, 0
    %p63 = por %p61, %p62
    %s65 = sadd.s32 %s64, 1
    %p68 = scmp.eq.s32.totalorder %s9, 3
    %p69 = scmp.ne.s32.totalorder %s64, %s66
    %p70 = scmp.eq.s32.totalorder %s9, 0
    %p71 = por %p69, %p70
    %p72 = scmp.ne.s32.totalorder %s64, %s66
    %p73 = scmp.eq.s32.totalorder %s14, 3
    %p74 = por %p72, %p73
    %p75 = scmp.ne.s32.totalorder %s66, %s67
    %p76 = scmp.eq.s32.totalorder %s14, 0
    %p77 = por %p75, %p76
    %p78 = scmp.ne.s32.totalorder %s66, %s67
    %p79 = scmp.eq.s32.totalorder %s15, 3
    %p80 = por %p78, %p79
    %p82 = scmp.ne.s32.totalorder %s67, %s81
    %p83 = scmp.eq.s32.totalorder %s15, 0
    %p84 = por %p82, %p83
    %s85 = ssub.s32 %s9, %s16
    %p86 = scmp.eq.s32.totalorder %s85, 0
    %s88 = sadd.s32 %s87, 1
    %s89 = scalar_select %p86, %s87, %s88
    %p92 = pneg %p86
    %p93 = scmp.eq.s32.totalorder %s9, 3
    %p94 = por %p92, %p93
    %p95 = scmp.ne.s32.totalorder %s87, %s90
    %p96 = scmp.eq.s32.totalorder %s9, 0
    %p97 = por %p95, %p96
    %p98 = scmp.ne.s32.totalorder %s87, %s90
    %p99 = scmp.eq.s32.totalorder %s14, 3
    %p100 = por %p98, %p99
    %p101 = scmp.ne.s32.totalorder %s90, %s91
    %p102 = scmp.eq.s32.totalorder %s14, 0
    %p103 = por %p101, %p102
    %p104 = scmp.ne.s32.totalorder %s90, %s91
    %p105 = scmp.eq.s32.totalorder %s15, 3
    %p106 = por %p104, %p105
    %p108 = scmp.ne.s32.totalorder %s91, %s107
    %p109 = scmp.eq.s32.totalorder %s15, 0
    %p110 = por %p108, %p109
    %p111 = scmp.le.s32.totalorder 1, %s9
    %p112 = scmp.lt.s32.totalorder %s9, 5
    %p113 = pnand %p111, %p112
    %p114 = pneg %p113
    // Predicated region
    $region9: #{autoencoder_forward.1} parent=5 // pred_check
      _
    $region10: #{autoencoder_forward.1} parent=5 // pred_check_branch
      %116 = sbr.rel (%p113) target = $region12
    $region11: #{autoencoder_forward.1} parent=5 // pred_region
      %s117 = ssub.s32 %s9, 1
      // Predicated region
      $region13: #{autoencoder_forward.1} parent=11 // pred_check
        %p118 = pneg %p56
      $region14: #{autoencoder_forward.1} parent=11 // pred_check_branch
        %120 = sbr.rel (%p118) target = $region16
      $region15: #{autoencoder_forward.1} parent=11 // pred_region
        _
      $region16: #{autoencoder_forward.1} parent=11 // pred_fallthru
        _
      // Predicated region
      $region17: #{autoencoder_forward.1} parent=11 // pred_check
        %p121 = pneg %p77
      $region18: #{autoencoder_forward.1} parent=11 // pred_check_branch
        %123 = sbr.rel (%p121) target = $region20
      $region19: #{autoencoder_forward.1} parent=11 // pred_region
        _
      $region20: #{autoencoder_forward.1} parent=11 // pred_fallthru
        _
    $region12: #{autoencoder_forward.1} parent=5 // pred_fallthru
      _
    %p124 = scmp.lt.s32.totalorder %s9, 4
    // Predicated region
    $region21: #{autoencoder_forward.1} parent=5 // pred_check
      %p125 = pneg %p124
    $region22: #{autoencoder_forward.1} parent=5 // pred_check_branch
      %127 = sbr.rel (%p125) target = $region24
    $region23: #{autoencoder_forward.1} parent=5 // pred_region
      // Predicated region
      $region25: #{autoencoder_forward.1} parent=23 // pred_check
        %p128 = pneg %p29
      $region26: #{autoencoder_forward.1} parent=23 // pred_check_branch
        %130 = sbr.rel (%p128) target = $region28
      $region27: #{autoencoder_forward.1} parent=23 // pred_region
        %s131 = smul.u32 4, %s9
        %p132 = scmp.lt.s32.totalorder %s131, 15
        %s133 = scalar_select %p132, %s131, 15
        %s134 = smul.addr %s133, 8
        %s135 = scalar_lea.vmem %s0, %s134
        %s136 = smul.u32 4, %s9
      $region28: #{autoencoder_forward.1} parent=23 // pred_fallthru
        _
    $region24: #{autoencoder_forward.1} parent=5 // pred_fallthru
      _
    %p137 = scmp.le.s32.totalorder 1, %s9
    %p138 = scmp.lt.s32.totalorder %s9, 5
    %p139 = pnand %p137, %p138
    %p140 = pneg %p139
    // Predicated region
    $region29: #{autoencoder_forward.1} parent=5 // pred_check
      _
    $region30: #{autoencoder_forward.1} parent=5 // pred_check_branch
      %142 = sbr.rel (%p139) target = $region32
    $region31: #{autoencoder_forward.1} parent=5 // pred_region
      %s143 = ssub.s32 %s9, 1
      %s144 = smul.u32 4, %s14
      %p145 = scmp.lt.s32.totalorder %s144, 15
      %s146 = scalar_select %p145, %s144, 15
      %s147 = smul.addr %s146, 8
      %s148 = scalar_lea.vmem %s0, %s147
      %p149 = pneg %p35
      %p150 = pneg %p32
      %p151 = pneg %p56
      %p152 = pneg %p53
      %p153 = pneg %p77
      %p154 = pneg %p74
      %p155 = pneg %p103
      %p156 = pneg %p100
      %s157 = smul.u32 4, %s14
      %p158 = scmp.lt.s32.totalorder %s157, 15
      %s159 = scalar_select %p158, %s157, 15
      %s160 = smul.addr %s159, 8
      %s161 = scalar_lea.vmem %s3, %s160
      %s162 = smul.u32 4, %s14
      %p163 = scmp.lt.s32.totalorder %s162, 15
      %s164 = scalar_select %p163, %s162, 15
      %s165 = smul.addr %s164, 8
      %s166 = scalar_lea.vmem %s0, %s165
      %s167 = smul.u32 4, %s14
      %s168 = smul.u32 4, %s14
      %p169 = scmp.lt.s32.totalorder %s168, 15
      %s170 = scalar_select %p169, %s168, 15
      %s171 = smul.addr %s170, 8
      %s172 = scalar_lea.vmem %s3, %s171
      %s173 = smul.u32 4, %s14
      %v175 = vld [vmem:[%s166] sm:$0xff]
      %v176 = vld [vmem:[%s166 + $0x8] sm:$0xff]
      %v177 = vld [vmem:[%s166 + $0x10] sm:$0xff]
      %v178 = vld [vmem:[%s166 + $0x18] sm:$0xff]
      %v179 = vpack.c.bf16 %v176, %v175
      %v180 = vpack.c.bf16 %v178, %v177
      %v181 = vld [vmem:[%s1] sm:$0xf]
      %v182 = vld [vmem:[%s1 + $0x4] sm:$0xf]
      %v183 = vld [vmem:[%s1 + $0x8] sm:$0xf]
      %v184 = vld [vmem:[%s1 + $0xc] sm:$0xf]
      %v185 = vld [vmem:[%s1 + $0x10] sm:$0xf]
      %v186 = vld [vmem:[%s1 + $0x14] sm:$0xf]
      %v187 = vld [vmem:[%s1 + $0x18] sm:$0xf]
      %v188 = vld [vmem:[%s1 + $0x1c] sm:$0xf]
      %v189 = vld [vmem:[%s1 + $0x20] sm:$0xf]
      %v190 = vld [vmem:[%s1 + $0x24] sm:$0xf]
      %v191 = vld [vmem:[%s1 + $0x28] sm:$0xf]
      %v192 = vld [vmem:[%s1 + $0x2c] sm:$0xf]
      %v193 = vld [vmem:[%s1 + $0x30] sm:$0xf]
      %v194 = vld [vmem:[%s1 + $0x34] sm:$0xf]
      %v195 = vld [vmem:[%s1 + $0x38] sm:$0xf]
      %v196 = vld [vmem:[%s1 + $0x3c] sm:$0xf]
      %v197 = vld [vmem:[%s2] sm:$0x1]
      %v199 = vlaneseq
      %v200 = vshrl.u32 %v199, 7
      %v201 = vsub.s32 0, %v200
      %v202 = vrot.slane %v197, %v201
      %v220 = vunpack.c.l.b16 %v181
      %v221 = vunpack.c.l.b16 %v182
      %v222 = vunpack.c.l.b16 %v183
      %v223 = vunpack.c.l.b16 %v184
      %v224 = vunpack.c.l.b16 %v185
      %v225 = vunpack.c.l.b16 %v186
      %v226 = vunpack.c.l.b16 %v187
      %v227 = vunpack.c.l.b16 %v188
      %v228 = vunpack.c.l.b16 %v189
      %v229 = vunpack.c.l.b16 %v190
      %v230 = vunpack.c.l.b16 %v191
      %v231 = vunpack.c.l.b16 %v192
      %v232 = vunpack.c.l.b16 %v193
      %v233 = vunpack.c.l.b16 %v194
      %v234 = vunpack.c.l.b16 %v195
      %v235 = vunpack.c.l.b16 %v196
      %v236 = vpack.c.b16 %v221, %v220
      %v237 = vpack.c.b16 %v223, %v222
      %v238 = vpack.c.b16 %v225, %v224
      %v239 = vpack.c.b16 %v227, %v226
      %v240 = vpack.c.b16 %v229, %v228
      %v241 = vpack.c.b16 %v231, %v230
      %v242 = vpack.c.b16 %v233, %v232
      %v243 = vpack.c.b16 %v235, %v234
      %252 = vmatprep.subr.bf16.mxu0 0
      %253 = vmatpush1.bf16.msra.mxu0 %v236
      %254 = vmatprep.subr.bf16.mxu0 0
      %255 = vmatpush1.bf16.msra.mxu0 %v237
      %256 = vmatprep.subr.bf16.mxu0 0
      %257 = vmatpush1.bf16.msra.mxu0 %v238
      %258 = vmatprep.subr.bf16.mxu0 0
      %259 = vmatpush1.bf16.msra.mxu0 %v239
      %260 = vmatprep.subr.bf16.mxu0 0
      %261 = vmatpush1.bf16.msra.mxu0 %v240
      %262 = vmatprep.subr.bf16.mxu0 0
      %263 = vmatpush1.bf16.msra.mxu0 %v241
      %264 = vmatprep.subr.bf16.mxu0 0
      %265 = vmatpush1.bf16.msra.mxu0 %v242
      %266 = vmatprep.subr.bf16.mxu0 0
      %267 = vmatpush1.bf16.msra.mxu0 %v243
      %268 = vmatprep.subr.bf16.mxu0 0
      %269 = vmatpush1.bf16.msra.mxu0 0
      %270 = vmatprep.subr.bf16.mxu0 0
      %271 = vmatpush1.bf16.msra.mxu0 0
      %272 = vmatprep.subr.bf16.mxu0 0
      %273 = vmatpush1.bf16.msra.mxu0 0
      %274 = vmatprep.subr.bf16.mxu0 0
      %275 = vmatpush1.bf16.msra.mxu0 0
      %276 = vmatprep.subr.bf16.mxu0 0
      %277 = vmatpush1.bf16.msra.mxu0 0
      %278 = vmatprep.subr.bf16.mxu0 0
      %279 = vmatpush1.bf16.msra.mxu0 0
      %280 = vmatprep.subr.bf16.mxu0 0
      %281 = vmatpush1.bf16.msra.mxu0 0
      %282 = vmatprep.subr.bf16.mxu0 0
      %283 = vmatpush1.bf16.msra.mxu0 0
      %284 = vmatprep.mubr.bf16.mxu0 0
      %285 = vmatmul.mubr.bf16.gmra.mrb[0].mxu0 %v179
      %v286 = vpop.f32.mrb[0].mxu0
      %v287 = vadd.f32 %v202, %v286
      %v288 = vpop.f32.mrb[0].mxu0
      %v289 = vpop.f32.mrb[0].mxu0
      %v290 = vadd.f32 %v202, %v289
      %v291 = vpop.f32.mrb[0].mxu0
      %292 = vmatprep.mubr.bf16.mxu0 0
      %293 = vmatmul.mubr.bf16.gmra.mrb[0].mxu0 %v180
      %v294 = vpop.f32.mrb[0].mxu0
      %v295 = vadd.f32 %v202, %v294
      %v296 = vpop.f32.mrb[0].mxu0
      %v297 = vpop.f32.mrb[0].mxu0
      %v298 = vadd.f32 %v202, %v297
      %v299 = vpop.f32.mrb[0].mxu0
      %300 = vdwg.mxu0
      %v301 = vmax.f32 %v287, 0.0
      %v302 = vmax.f32 %v290, 0.0
      %v303 = vmax.f32 %v295, 0.0
      %v304 = vmax.f32 %v298, 0.0
      %v305 = vpack.c.bf16 %v302, %v301
      %v306 = vpack.c.bf16 %v304, %v303
      %s307 = scalar_lea.vmem %s1, 64
      %v308 = vld [vmem:[%s307] sm:$0xf]
      %v309 = vld [vmem:[%s307 + $0x4] sm:$0xf]
      %v310 = vld [vmem:[%s307 + $0x8] sm:$0xf]
      %v311 = vld [vmem:[%s307 + $0xc] sm:$0xf]
      %v312 = vld [vmem:[%s307 + $0x10] sm:$0xf]
      %v313 = vld [vmem:[%s307 + $0x14] sm:$0xf]
      %v314 = vld [vmem:[%s307 + $0x18] sm:$0xf]
      %v315 = vld [vmem:[%s307 + $0x1c] sm:$0xf]
      %v316 = vld [vmem:[%s307 + $0x20] sm:$0xf]
      %v317 = vld [vmem:[%s307 + $0x24] sm:$0xf]
      %v318 = vld [vmem:[%s307 + $0x28] sm:$0xf]
      %v319 = vld [vmem:[%s307 + $0x2c] sm:$0xf]
      %v320 = vld [vmem:[%s307 + $0x30] sm:$0xf]
      %v321 = vld [vmem:[%s307 + $0x34] sm:$0xf]
      %v322 = vld [vmem:[%s307 + $0x38] sm:$0xf]
      %v323 = vld [vmem:[%s307 + $0x3c] sm:$0xf]
      %s324 = scalar_lea.vmem %s2, 1
      %v325 = vld [vmem:[%s324] sm:$0x1]
      %v327 = vlaneseq
      %v328 = vshrl.u32 %v327, 7
      %v329 = vsub.s32 0, %v328
      %v330 = vrot.slane %v325, %v329
      %v348 = vunpack.c.l.b16 %v308
      %v349 = vunpack.c.l.b16 %v309
      %v350 = vunpack.c.l.b16 %v310
      %v351 = vunpack.c.l.b16 %v311
      %v352 = vunpack.c.l.b16 %v312
      %v353 = vunpack.c.l.b16 %v313
      %v354 = vunpack.c.l.b16 %v314
      %v355 = vunpack.c.l.b16 %v315
      %v356 = vunpack.c.l.b16 %v316
      %v357 = vunpack.c.l.b16 %v317
      %v358 = vunpack.c.l.b16 %v318
      %v359 = vunpack.c.l.b16 %v319
      %v360 = vunpack.c.l.b16 %v320
      %v361 = vunpack.c.l.b16 %v321
      %v362 = vunpack.c.l.b16 %v322
      %v363 = vunpack.c.l.b16 %v323
      %v364 = vpack.c.b16 %v349, %v348
      %v365 = vpack.c.b16 %v351, %v350
      %v366 = vpack.c.b16 %v353, %v352
      %v367 = vpack.c.b16 %v355, %v354
      %v368 = vpack.c.b16 %v357, %v356
      %v369 = vpack.c.b16 %v359, %v358
      %v370 = vpack.c.b16 %v361, %v360
      %v371 = vpack.c.b16 %v363, %v362
      %380 = vmatprep.subr.bf16.mxu0 0
      %381 = vmatpush1.bf16.msra.mxu0 %v364
      %382 = vmatprep.subr.bf16.mxu0 0
      %383 = vmatpush1.bf16.msra.mxu0 %v365
      %384 = vmatprep.subr.bf16.mxu0 0
      %385 = vmatpush1.bf16.msra.mxu0 %v366
      %386 = vmatprep.subr.bf16.mxu0 0
      %387 = vmatpush1.bf16.msra.mxu0 %v367
      %388 = vmatprep.subr.bf16.mxu0 0
      %389 = vmatpush1.bf16.msra.mxu0 %v368
      %390 = vmatprep.subr.bf16.mxu0 0
      %391 = vmatpush1.bf16.msra.mxu0 %v369
      %392 = vmatprep.subr.bf16.mxu0 0
      %393 = vmatpush1.bf16.msra.mxu0 %v370
      %394 = vmatprep.subr.bf16.mxu0 0
      %395 = vmatpush1.bf16.msra.mxu0 %v371
      %396 = vmatprep.subr.bf16.mxu0 0
      %397 = vmatpush1.bf16.msra.mxu0 0
      %398 = vmatprep.subr.bf16.mxu0 0
      %399 = vmatpush1.bf16.msra.mxu0 0
      %400 = vmatprep.subr.bf16.mxu0 0
      %401 = vmatpush1.bf16.msra.mxu0 0
      %402 = vmatprep.subr.bf16.mxu0 0
      %403 = vmatpush1.bf16.msra.mxu0 0
      %404 = vmatprep.subr.bf16.mxu0 0
      %405 = vmatpush1.bf16.msra.mxu0 0
      %406 = vmatprep.subr.bf16.mxu0 0
      %407 = vmatpush1.bf16.msra.mxu0 0
      %408 = vmatprep.subr.bf16.mxu0 0
      %409 = vmatpush1.bf16.msra.mxu0 0
      %410 = vmatprep.subr.bf16.mxu0 0
      %411 = vmatpush1.bf16.msra.mxu0 0
      %412 = vmatprep.mubr.bf16.mxu0 0
      %413 = vmatmul.mubr.bf16.gmra.mrb[0].mxu0 %v305
      %v414 = vpop.f32.mrb[0].mxu0
      %v415 = vadd.f32 %v330, %v414
      %v416 = vpop.f32.mrb[0].mxu0
      %v417 = vpop.f32.mrb[0].mxu0
      %v418 = vadd.f32 %v330, %v417
      %v419 = vpop.f32.mrb[0].mxu0
      %420 = vmatprep.mubr.bf16.mxu0 0
      %421 = vmatmul.mubr.bf16.gmra.mrb[0].mxu0 %v306
      %v422 = vpop.f32.mrb[0].mxu0
      %v423 = vadd.f32 %v330, %v422
      %v424 = vpop.f32.mrb[0].mxu0
      %v425 = vpop.f32.mrb[0].mxu0
      %v426 = vadd.f32 %v330, %v425
      %v427 = vpop.f32.mrb[0].mxu0
      %428 = vdwg.mxu0
      %v429 = vmax.f32 %v415, 0.0
      %v430 = vmax.f32 %v418, 0.0
      %v431 = vmax.f32 %v423, 0.0
      %v432 = vmax.f32 %v426, 0.0
      %v433 = vpack.c.bf16 %v430, %v429
      %v434 = vpack.c.bf16 %v432, %v431
      %s435 = scalar_lea.vmem %s1, 128
      %v436 = vld [vmem:[%s435] sm:$0xf]
      %v437 = vld [vmem:[%s435 + $0x4] sm:$0xf]
      %v438 = vld [vmem:[%s435 + $0x8] sm:$0xf]
      %v439 = vld [vmem:[%s435 + $0xc] sm:$0xf]
      %v440 = vld [vmem:[%s435 + $0x10] sm:$0xf]
      %v441 = vld [vmem:[%s435 + $0x14] sm:$0xf]
      %v442 = vld [vmem:[%s435 + $0x18] sm:$0xf]
      %v443 = vld [vmem:[%s435 + $0x1c] sm:$0xf]
      %v444 = vld [vmem:[%s435 + $0x20] sm:$0xf]
      %v445 = vld [vmem:[%s435 + $0x24] sm:$0xf]
      %v446 = vld [vmem:[%s435 + $0x28] sm:$0xf]
      %v447 = vld [vmem:[%s435 + $0x2c] sm:$0xf]
      %v448 = vld [vmem:[%s435 + $0x30] sm:$0xf]
      %v449 = vld [vmem:[%s435 + $0x34] sm:$0xf]
      %v450 = vld [vmem:[%s435 + $0x38] sm:$0xf]
      %v451 = vld [vmem:[%s435 + $0x3c] sm:$0xf]
      %s452 = scalar_lea.vmem %s2, 2
      %v453 = vld [vmem:[%s452] sm:$0x1]
      %v455 = vlaneseq
      %v456 = vshrl.u32 %v455, 7
      %v457 = vsub.s32 0, %v456
      %v458 = vrot.slane %v453, %v457
      %v476 = vunpack.c.l.b16 %v436
      %v477 = vunpack.c.l.b16 %v437
      %v478 = vunpack.c.l.b16 %v438
      %v479 = vunpack.c.l.b16 %v439
      %v480 = vunpack.c.l.b16 %v440
      %v481 = vunpack.c.l.b16 %v441
      %v482 = vunpack.c.l.b16 %v442
      %v483 = vunpack.c.l.b16 %v443
      %v484 = vunpack.c.l.b16 %v444
      %v485 = vunpack.c.l.b16 %v445
      %v486 = vunpack.c.l.b16 %v446
      %v487 = vunpack.c.l.b16 %v447
      %v488 = vunpack.c.l.b16 %v448
      %v489 = vunpack.c.l.b16 %v449
      %v490 = vunpack.c.l.b16 %v450
      %v491 = vunpack.c.l.b16 %v451
      %v492 = vpack.c.b16 %v477, %v476
      %v493 = vpack.c.b16 %v479, %v478
      %v494 = vpack.c.b16 %v481, %v480
      %v495 = vpack.c.b16 %v483, %v482
      %v496 = vpack.c.b16 %v485, %v484
      %v497 = vpack.c.b16 %v487, %v486
      %v498 = vpack.c.b16 %v489, %v488
      %v499 = vpack.c.b16 %v491, %v490
      %508 = vmatprep.subr.bf16.mxu0 0
      %509 = vmatpush1.bf16.msra.mxu0 %v492
      %510 = vmatprep.subr.bf16.mxu0 0
      %511 = vmatpush1.bf16.msra.mxu0 %v493
      %512 = vmatprep.subr.bf16.mxu0 0
      %513 = vmatpush1.bf16.msra.mxu0 %v494
      %514 = vmatprep.subr.bf16.mxu0 0
      %515 = vmatpush1.bf16.msra.mxu0 %v495
      %516 = vmatprep.subr.bf16.mxu0 0
      %517 = vmatpush1.bf16.msra.mxu0 %v496
      %518 = vmatprep.subr.bf16.mxu0 0
      %519 = vmatpush1.bf16.msra.mxu0 %v497
      %520 = vmatprep.subr.bf16.mxu0 0
      %521 = vmatpush1.bf16.msra.mxu0 %v498
      %522 = vmatprep.subr.bf16.mxu0 0
      %523 = vmatpush1.bf16.msra.mxu0 %v499
      %524 = vmatprep.subr.bf16.mxu0 0
      %525 = vmatpush1.bf16.msra.mxu0 0
      %526 = vmatprep.subr.bf16.mxu0 0
      %527 = vmatpush1.bf16.msra.mxu0 0
      %528 = vmatprep.subr.bf16.mxu0 0
      %529 = vmatpush1.bf16.msra.mxu0 0
      %530 = vmatprep.subr.bf16.mxu0 0
      %531 = vmatpush1.bf16.msra.mxu0 0
      %532 = vmatprep.subr.bf16.mxu0 0
      %533 = vmatpush1.bf16.msra.mxu0 0
      %534 = vmatprep.subr.bf16.mxu0 0
      %535 = vmatpush1.bf16.msra.mxu0 0
      %536 = vmatprep.subr.bf16.mxu0 0
      %537 = vmatpush1.bf16.msra.mxu0 0
      %538 = vmatprep.subr.bf16.mxu0 0
      %539 = vmatpush1.bf16.msra.mxu0 0
      %540 = vmatprep.mubr.bf16.mxu0 0
      %541 = vmatmul.mubr.bf16.gmra.mrb[0].mxu0 %v433
      %v542 = vpop.f32.mrb[0].mxu0
      %v543 = vadd.f32 %v458, %v542
      %v544 = vpop.f32.mrb[0].mxu0
      %v545 = vpop.f32.mrb[0].mxu0
      %v546 = vadd.f32 %v458, %v545
      %v547 = vpop.f32.mrb[0].mxu0
      %548 = vmatprep.mubr.bf16.mxu0 0
      %549 = vmatmul.mubr.bf16.gmra.mrb[0].mxu0 %v434
      %v550 = vpop.f32.mrb[0].mxu0
      %v551 = vadd.f32 %v458, %v550
      %v552 = vpop.f32.mrb[0].mxu0
      %v553 = vpop.f32.mrb[0].mxu0
      %v554 = vadd.f32 %v458, %v553
      %v555 = vpop.f32.mrb[0].mxu0
      %556 = vdwg.mxu0
      %v557 = vmax.f32 %v543, 0.0
      %v558 = vmax.f32 %v546, 0.0
      %v559 = vmax.f32 %v551, 0.0
      %v560 = vmax.f32 %v554, 0.0
      %v561 = vpack.c.bf16 %v558, %v557
      %v562 = vpack.c.bf16 %v560, %v559
      %s563 = scalar_lea.vmem %s1, 192
      %v564 = vld [vmem:[%s563] sm:$0xf]
      %v565 = vld [vmem:[%s563 + $0x4] sm:$0xf]
      %v566 = vld [vmem:[%s563 + $0x8] sm:$0xf]
      %v567 = vld [vmem:[%s563 + $0xc] sm:$0xf]
      %v568 = vld [vmem:[%s563 + $0x10] sm:$0xf]
      %v569 = vld [vmem:[%s563 + $0x14] sm:$0xf]
      %v570 = vld [vmem:[%s563 + $0x18] sm:$0xf]
      %v571 = vld [vmem:[%s563 + $0x1c] sm:$0xf]
      %v572 = vld [vmem:[%s563 + $0x20] sm:$0xf]
      %v573 = vld [vmem:[%s563 + $0x24] sm:$0xf]
      %v574 = vld [vmem:[%s563 + $0x28] sm:$0xf]
      %v575 = vld [vmem:[%s563 + $0x2c] sm:$0xf]
      %v576 = vld [vmem:[%s563 + $0x30] sm:$0xf]
      %v577 = vld [vmem:[%s563 + $0x34] sm:$0xf]
      %v578 = vld [vmem:[%s563 + $0x38] sm:$0xf]
      %v579 = vld [vmem:[%s563 + $0x3c] sm:$0xf]
      %s580 = scalar_lea.vmem %s2, 3
      %v581 = vld [vmem:[%s580] sm:$0x1]
      %v583 = vlaneseq
      %v584 = vshrl.u32 %v583, 7
      %v585 = vsub.s32 0, %v584
      %v586 = vrot.slane %v581, %v585
      %v604 = vunpack.c.l.b16 %v564
      %v605 = vunpack.c.l.b16 %v565
      %v606 = vunpack.c.l.b16 %v566
      %v607 = vunpack.c.l.b16 %v567
      %v608 = vunpack.c.l.b16 %v568
      %v609 = vunpack.c.l.b16 %v569
      %v610 = vunpack.c.l.b16 %v570
      %v611 = vunpack.c.l.b16 %v571
      %v612 = vunpack.c.l.b16 %v572
      %v613 = vunpack.c.l.b16 %v573
      %v614 = vunpack.c.l.b16 %v574
      %v615 = vunpack.c.l.b16 %v575
      %v616 = vunpack.c.l.b16 %v576
      %v617 = vunpack.c.l.b16 %v577
      %v618 = vunpack.c.l.b16 %v578
      %v619 = vunpack.c.l.b16 %v579
      %v620 = vpack.c.b16 %v605, %v604
      %v621 = vpack.c.b16 %v607, %v606
      %v622 = vpack.c.b16 %v609, %v608
      %v623 = vpack.c.b16 %v611, %v610
      %v624 = vpack.c.b16 %v613, %v612
      %v625 = vpack.c.b16 %v615, %v614
      %v626 = vpack.c.b16 %v617, %v616
      %v627 = vpack.c.b16 %v619, %v618
      %636 = vmatprep.subr.bf16.mxu0 0
      %637 = vmatpush1.bf16.msra.mxu0 %v620
      %638 = vmatprep.subr.bf16.mxu0 0
      %639 = vmatpush1.bf16.msra.mxu0 %v621
      %640 = vmatprep.subr.bf16.mxu0 0
      %641 = vmatpush1.bf16.msra.mxu0 %v622
      %642 = vmatprep.subr.bf16.mxu0 0
      %643 = vmatpush1.bf16.msra.mxu0 %v623
      %644 = vmatprep.subr.bf16.mxu0 0
      %645 = vmatpush1.bf16.msra.mxu0 %v624
      %646 = vmatprep.subr.bf16.mxu0 0
      %647 = vmatpush1.bf16.msra.mxu0 %v625
      %648 = vmatprep.subr.bf16.mxu0 0
      %649 = vmatpush1.bf16.msra.mxu0 %v626
      %650 = vmatprep.subr.bf16.mxu0 0
      %651 = vmatpush1.bf16.msra.mxu0 %v627
      %652 = vmatprep.subr.bf16.mxu0 0
      %653 = vmatpush1.bf16.msra.mxu0 0
      %654 = vmatprep.subr.bf16.mxu0 0
      %655 = vmatpush1.bf16.msra.mxu0 0
      %656 = vmatprep.subr.bf16.mxu0 0
      %657 = vmatpush1.bf16.msra.mxu0 0
      %658 = vmatprep.subr.bf16.mxu0 0
      %659 = vmatpush1.bf16.msra.mxu0 0
      %660 = vmatprep.subr.bf16.mxu0 0
      %661 = vmatpush1.bf16.msra.mxu0 0
      %662 = vmatprep.subr.bf16.mxu0 0
      %663 = vmatpush1.bf16.msra.mxu0 0
      %664 = vmatprep.subr.bf16.mxu0 0
      %665 = vmatpush1.bf16.msra.mxu0 0
      %666 = vmatprep.subr.bf16.mxu0 0
      %667 = vmatpush1.bf16.msra.mxu0 0
      %668 = vmatprep.mubr.bf16.mxu0 0
      %669 = vmatmul.mubr.bf16.gmra.mrb[0].mxu0 %v561
      %v670 = vpop.f32.mrb[0].mxu0
      %v671 = vadd.f32 %v586, %v670
      %v672 = vpop.f32.mrb[0].mxu0
      %v673 = vpop.f32.mrb[0].mxu0
      %v674 = vadd.f32 %v586, %v673
      %v675 = vpop.f32.mrb[0].mxu0
      %676 = vmatprep.mubr.bf16.mxu0 0
      %677 = vmatmul.mubr.bf16.gmra.mrb[0].mxu0 %v562
      %v678 = vpop.f32.mrb[0].mxu0
      %v679 = vadd.f32 %v586, %v678
      %v680 = vpop.f32.mrb[0].mxu0
      %v681 = vpop.f32.mrb[0].mxu0
      %v682 = vadd.f32 %v586, %v681
      %v683 = vpop.f32.mrb[0].mxu0
      %684 = vdwg.mxu0
      %v685 = vmax.f32 %v671, 0.0
      %v686 = vmax.f32 %v674, 0.0
      %v687 = vmax.f32 %v679, 0.0
      %v688 = vmax.f32 %v682, 0.0
      %v689 = vpack.c.bf16 %v686, %v685
      %v690 = vpack.c.bf16 %v688, %v687
      %s691 = scalar_lea.vmem %s1, 256
      %v692 = vld [vmem:[%s691] sm:$0xf]
      %v693 = vld [vmem:[%s691 + $0x4] sm:$0xf]
      %v694 = vld [vmem:[%s691 + $0x8] sm:$0xf]
      %v695 = vld [vmem:[%s691 + $0xc] sm:$0xf]
      %v696 = vld [vmem:[%s691 + $0x10] sm:$0xf]
      %v697 = vld [vmem:[%s691 + $0x14] sm:$0xf]
      %v698 = vld [vmem:[%s691 + $0x18] sm:$0xf]
      %v699 = vld [vmem:[%s691 + $0x1c] sm:$0xf]
      %v700 = vld [vmem:[%s691 + $0x20] sm:$0xf]
      %v701 = vld [vmem:[%s691 + $0x24] sm:$0xf]
      %v702 = vld [vmem:[%s691 + $0x28] sm:$0xf]
      %v703 = vld [vmem:[%s691 + $0x2c] sm:$0xf]
      %v704 = vld [vmem:[%s691 + $0x30] sm:$0xf]
      %v705 = vld [vmem:[%s691 + $0x34] sm:$0xf]
      %v706 = vld [vmem:[%s691 + $0x38] sm:$0xf]
      %v707 = vld [vmem:[%s691 + $0x3c] sm:$0xf]
      %s708 = scalar_lea.vmem %s2, 4
      %v709 = vld [vmem:[%s708] sm:$0x1]
      %v711 = vlaneseq
      %v712 = vshrl.u32 %v711, 7
      %v713 = vsub.s32 0, %v712
      %v714 = vrot.slane %v709, %v713
      %v732 = vunpack.c.l.b16 %v692
      %v733 = vunpack.c.l.b16 %v693
      %v734 = vunpack.c.l.b16 %v694
      %v735 = vunpack.c.l.b16 %v695
      %v736 = vunpack.c.l.b16 %v696
      %v737 = vunpack.c.l.b16 %v697
      %v738 = vunpack.c.l.b16 %v698
      %v739 = vunpack.c.l.b16 %v699
      %v740 = vunpack.c.l.b16 %v700
      %v741 = vunpack.c.l.b16 %v701
      %v742 = vunpack.c.l.b16 %v702
      %v743 = vunpack.c.l.b16 %v703
      %v744 = vunpack.c.l.b16 %v704
      %v745 = vunpack.c.l.b16 %v705
      %v746 = vunpack.c.l.b16 %v706
      %v747 = vunpack.c.l.b16 %v707
      %v748 = vpack.c.b16 %v733, %v732
      %v749 = vpack.c.b16 %v735, %v734
      %v750 = vpack.c.b16 %v737, %v736
      %v751 = vpack.c.b16 %v739, %v738
      %v752 = vpack.c.b16 %v741, %v740
      %v753 = vpack.c.b16 %v743, %v742
      %v754 = vpack.c.b16 %v745, %v744
      %v755 = vpack.c.b16 %v747, %v746
      %764 = vmatprep.subr.bf16.mxu0 0
      %765 = vmatpush1.bf16.msra.mxu0 %v748
      %766 = vmatprep.subr.bf16.mxu0 0
      %767 = vmatpush1.bf16.msra.mxu0 %v749
      %768 = vmatprep.subr.bf16.mxu0 0
      %769 = vmatpush1.bf16.msra.mxu0 %v750
      %770 = vmatprep.subr.bf16.mxu0 0
      %771 = vmatpush1.bf16.msra.mxu0 %v751
      %772 = vmatprep.subr.bf16.mxu0 0
      %773 = vmatpush1.bf16.msra.mxu0 %v752
      %774 = vmatprep.subr.bf16.mxu0 0
      %775 = vmatpush1.bf16.msra.mxu0 %v753
      %776 = vmatprep.subr.bf16.mxu0 0
      %777 = vmatpush1.bf16.msra.mxu0 %v754
      %778 = vmatprep.subr.bf16.mxu0 0
      %779 = vmatpush1.bf16.msra.mxu0 %v755
      %780 = vmatprep.subr.bf16.mxu0 0
      %781 = vmatpush1.bf16.msra.mxu0 0
      %782 = vmatprep.subr.bf16.mxu0 0
      %783 = vmatpush1.bf16.msra.mxu0 0
      %784 = vmatprep.subr.bf16.mxu0 0
      %785 = vmatpush1.bf16.msra.mxu0 0
      %786 = vmatprep.subr.bf16.mxu0 0
      %787 = vmatpush1.bf16.msra.mxu0 0
      %788 = vmatprep.subr.bf16.mxu0 0
      %789 = vmatpush1.bf16.msra.mxu0 0
      %790 = vmatprep.subr.bf16.mxu0 0
      %791 = vmatpush1.bf16.msra.mxu0 0
      %792 = vmatprep.subr.bf16.mxu0 0
      %793 = vmatpush1.bf16.msra.mxu0 0
      %794 = vmatprep.subr.bf16.mxu0 0
      %795 = vmatpush1.bf16.msra.mxu0 0
      %796 = vmatprep.mubr.bf16.mxu0 0
      %797 = vmatmul.mubr.bf16.gmra.mrb[0].mxu0 %v689
      %v798 = vpop.f32.mrb[0].mxu0
      %v799 = vadd.f32 %v714, %v798
      %v800 = vpop.f32.mrb[0].mxu0
      %v801 = vpop.f32.mrb[0].mxu0
      %v802 = vadd.f32 %v714, %v801
      %v803 = vpop.f32.mrb[0].mxu0
      %804 = vmatprep.mubr.bf16.mxu0 0
      %805 = vmatmul.mubr.bf16.gmra.mrb[0].mxu0 %v690
      %v806 = vpop.f32.mrb[0].mxu0
      %v807 = vadd.f32 %v714, %v806
      %v808 = vpop.f32.mrb[0].mxu0
      %v809 = vpop.f32.mrb[0].mxu0
      %v810 = vadd.f32 %v714, %v809
      %v811 = vpop.f32.mrb[0].mxu0
      %812 = vdwg.mxu0
      %v813 = vxor.u32 %v799, 2147483648
      %v814 = vxor.u32 %v802, 2147483648
      %v815 = vxor.u32 %v807, 2147483648
      %v816 = vxor.u32 %v810, 2147483648
      %v817 = vmul.f32 %v813, 1.442695
      %v818 = vpow.pop %v817
      %v819 = vmul.f32 %v814, 1.442695
      %v820 = vpow.pop %v819
      %v821 = vmul.f32 %v815, 1.442695
      %v822 = vpow.pop %v821
      %v823 = vmul.f32 %v816, 1.442695
      %v824 = vpow.pop %v823
      %v825 = vadd.f32 %v818, 1.0
      %v826 = vadd.f32 %v820, 1.0
      %v827 = vadd.f32 %v822, 1.0
      %v828 = vadd.f32 %v824, 1.0
      %v829 = vrcp.pop %v825
      %v830 = vmul.f32 1.0, %v829
      %v831 = vrcp.pop %v826
      %v832 = vmul.f32 1.0, %v831
      %v833 = vrcp.pop %v827
      %v834 = vmul.f32 1.0, %v833
      %v835 = vrcp.pop %v828
      %v836 = vmul.f32 1.0, %v835
      %837 = vst [vmem:[%s172] sm:$0xff] %v830
      %838 = vst [vmem:[%s172 + $0x8] sm:$0xff] %v832
      %839 = vst [vmem:[%s172 + $0x10] sm:$0xff] %v834
      %840 = vst [vmem:[%s172 + $0x18] sm:$0xff] %v836
      %s841 = smul.u32 4, %s14
      %p842 = scmp.lt.s32.totalorder %s841, 15
      %s843 = scalar_select %p842, %s841, 15
      %s844 = smul.addr %s843, 8
      %s845 = scalar_lea.vmem %s3, %s844
      // Predicated region
      $region33: #{autoencoder_forward.1} parent=31 // pred_check
        %p846 = pneg %p100
      $region34: #{autoencoder_forward.1} parent=31 // pred_check_branch
        %848 = sbr.rel (%p846) target = $region36
      $region35: #{autoencoder_forward.1} parent=31 // pred_region
        %s849 = smul.u32 4, %s14
      $region36: #{autoencoder_forward.1} parent=31 // pred_fallthru
        _
    $region32: #{autoencoder_forward.1} parent=5 // pred_fallthru
      _
    %p850 = scmp.le.s32.totalorder 2, %s9
    // Predicated region
    $region37: #{autoencoder_forward.1} parent=5 // pred_check
      %p851 = pneg %p850
    $region38: #{autoencoder_forward.1} parent=5 // pred_check_branch
      %853 = sbr.rel (%p851) target = $region40
    $region39: #{autoencoder_forward.1} parent=5 // pred_region
      %s854 = ssub.s32 %s9, 2
      // Predicated region
      $region41: #{autoencoder_forward.1} parent=39 // pred_check
        %p855 = pneg %p106
      $region42: #{autoencoder_forward.1} parent=39 // pred_check_branch
        %857 = sbr.rel (%p855) target = $region44
      $region43: #{autoencoder_forward.1} parent=39 // pred_region
        %s858 = smul.u32 4, %s15
        %p859 = scmp.lt.s32.totalorder %s858, 15
        %s860 = scalar_select %p859, %s858, 15
        %s861 = smul.addr %s860, 8
        %s862 = scalar_lea.vmem %s3, %s861
      $region44: #{autoencoder_forward.1} parent=39 // pred_fallthru
        _
    $region40: #{autoencoder_forward.1} parent=5 // pred_fallthru
      _
  $region6: #{autoencoder_forward.1} parent=0 // loop_footer
    %s13 = sadd.s32 1, %s9
  $region7: #{autoencoder_forward.1} parent=0 // loop_footer_branch
    %8 = sbr.rel target = $region3
  $region8: #{autoencoder_forward.1} parent=0 // loop_exit
    _

</llo_original>
